<compile_context>
chip_gen: v5e
topology: v5e:2x2
jax: 0.10.0
libtpu: 0.0.40
codegen_flags: <defaults>
</compile_context>

<pallas_src>
import math

import jax
import jax.numpy as jnp
from jax.experimental import pallas as pl
from jax.experimental.pallas import tpu as pltpu


def _round_up(n, m):
    return ((n + m - 1) // m) * m


def _mlp_kernel(z_ref, x_ref, w1z_ref, w1x_ref, b1_ref, w2_ref, b2_ref, out_ref):
    # z:(TM,Zd) x:(TM,Xd)  w1z:(Zd,H) w1x:(Xd,H) b1:(1,H)  w2:(H,A) b2:(1,A)
    # out:(TM,A)
    zb = z_ref[...].astype(jnp.bfloat16)   # no-op if z already bf16
    xb = x_ref[...].astype(jnp.bfloat16)
    # Layer 1 with the concat fused via split weights (bf16 MXU, f32 accumulate).
    h = jnp.dot(zb, w1z_ref[...], preferred_element_type=jnp.float32)
    h = h + jnp.dot(xb, w1x_ref[...], preferred_element_type=jnp.float32)
    h = h + b1_ref[...]
    # LeakyReLU, negative_slope = 0.01 (nn.LeakyReLU() default), kept in f32.
    h = jnp.where(h > 0, h, 0.01 * h)
    # Layer 2.
    y = jnp.dot(h.astype(jnp.bfloat16), w2_ref[...], preferred_element_type=jnp.float32)
    y = y + b2_ref[...]
    out_ref[...] = y.astype(out_ref.dtype)


def netG2_att_forward(z, x, params, *, block_m=512, out_dtype=jnp.float32):
    """z: (B, z_dim), x: (B, X_dim) (f32 or bf16)  ->  (B, att_dim) out_dtype."""
    w1z, w1x, b1, w2, b2 = params
    B, z_dim = z.shape
    X_dim = x.shape[1]
    h_dim = w1z.shape[1]
    att_dim = w2.shape[1]

    # Batch tile: large tiles for large batches; if the batch would fit in one
    # grid step, split into (at least) two so both v7x TensorCores are used.
    tm = min(block_m, _round_up(B, 8))
    if B > 8 and pl.cdiv(B, tm) < 2:
        tm = _round_up(pl.cdiv(B, 2), 8)
    grid = (pl.cdiv(B, tm),)  # last block may be ragged; Pallas handles it.

    def act_spec(d):
        return pl.BlockSpec((tm, d), lambda i: (i, 0))

    def resident(a):  # full array, same block every step -> stays in VMEM
        return pl.BlockSpec(a.shape, lambda i: (0, 0))

    flops = 2 * B * ((z_dim + X_dim) * h_dim + h_dim * att_dim)
    bytes_accessed = (
        z.size * z.dtype.itemsize
        + x.size * x.dtype.itemsize
        + sum(int(p.size) * p.dtype.itemsize for p in (w1z, w1x, b1, w2, b2))
        + B * att_dim * jnp.dtype(out_dtype).itemsize
    )

    return pl.pallas_call(
        _mlp_kernel,
        out_shape=jax.ShapeDtypeStruct((B, att_dim), out_dtype),
        grid=grid,
        in_specs=[
            act_spec(z_dim),
            act_spec(X_dim),
            resident(w1z),
            resident(w1x),
            resident(b1),
            resident(w2),
            resident(b2),
        ],
        out_specs=pl.BlockSpec((tm, att_dim), lambda i: (i, 0)),
        compiler_params=pltpu.CompilerParams(dimension_semantics=("parallel",)),
        cost_estimate=pl.CostEstimate(
            flops=flops, transcendentals=0, bytes_accessed=bytes_accessed
        ),
    )(z, x, w1z, w1x, b1, w2, b2)


def init_params(key, z_dim, X_dim, h_dim, att_dim):
    """PyTorch-style U(+/- 1/sqrt(fan_in)) init; W1 pre-split, weights in bf16.

    For production shapes, pass X_dim / att_dim already padded to multiples of
    128 (e.g. 1000 -> 1024) so the kernel's loads/stores are lane-dense.
    """
    k1, k2, k3, k4 = jax.random.split(key, 4)
    d_in = z_dim + X_dim
    lim1 = 1.0 / math.sqrt(d_in)
    lim2 = 1.0 / math.sqrt(h_dim)
    w1 = jax.random.uniform(k1, (d_in, h_dim), jnp.float32, -lim1, lim1)
    b1 = jax.random.uniform(k2, (1, h_dim), jnp.float32, -lim1, lim1)
    w2 = jax.random.uniform(k3, (h_dim, att_dim), jnp.float32, -lim2, lim2)
    b2 = jax.random.uniform(k4, (1, att_dim), jnp.float32, -lim2, lim2)
    w1z = w1[:z_dim].astype(jnp.bfloat16)
    w1x = w1[z_dim:].astype(jnp.bfloat16)
    return w1z, w1x, b1, w2.astype(jnp.bfloat16), b2


if __name__ == "__main__":
    # Small, lane-aligned shapes consistent with the module
    # (z_dim + X_dim -> h_dim -> att_dim).  Real module: X_dim=1000, h_dim=1500.
    B, z_dim, X_dim, h_dim, att_dim = 20, 32, 128, 256, 128

    key = jax.random.PRNGKey(0)
    kz, kx, kp = jax.random.split(key, 3)
    z = jax.random.normal(kz, (B, z_dim), jnp.float32)
    x = jax.random.normal(kx, (B, X_dim), jnp.float32)
    params = init_params(kp, z_dim, X_dim, h_dim, att_dim)
    w1z, w1x, b1, w2, b2 = params

    # Reference with matching bf16-operand / f32-accumulate math (tight check).
    h_ref = (
        jnp.dot(z.astype(jnp.bfloat16), w1z, preferred_element_type=jnp.float32)
        + jnp.dot(x.astype(jnp.bfloat16), w1x, preferred_element_type=jnp.float32)
        + b1
    )
    h_ref = jnp.where(h_ref > 0, h_ref, 0.01 * h_ref)
    ref_bf16 = (
        jnp.dot(h_ref.astype(jnp.bfloat16), w2, preferred_element_type=jnp.float32) + b2
    )

    # Full-f32 reference of the original module semantics (loose check).
    w1_f32 = jnp.concatenate([w1z.astype(jnp.float32), w1x.astype(jnp.float32)], axis=0)
    inp = jnp.concatenate([z, x], axis=1)
    h32 = inp @ w1_f32 + b1
    h32 = jnp.where(h32 > 0, h32, 0.01 * h32)
    ref_f32 = h32 @ w2.astype(jnp.float32) + b2

    # 1) Default tile: B=20 triggers the >=2-grid-step split (tm=16, ragged
    #    final block handled by Pallas, no wrapper pad/slice), f32 inputs.
    out = jax.block_until_ready(netG2_att_forward(z, x, params))
    assert out.shape == (B, att_dim) and out.dtype == jnp.float32
    assert jnp.allclose(out, ref_bf16, atol=2e-3, rtol=2e-3)
    assert jnp.allclose(out, ref_f32, atol=7e-2, rtol=7e-2)

    # 2) bf16 activations in HBM (preferred fast path) + tiny tile so a
    #    multi-step grid with a ragged final block is also exercised.
    out_bf16_in = jax.block_until_ready(
        netG2_att_forward(
            z.astype(jnp.bfloat16), x.astype(jnp.bfloat16), params, block_m=8
        )
    )
    assert out_bf16_in.shape == (B, att_dim)
    assert jnp.allclose(out_bf16_in, ref_bf16, atol=2e-3, rtol=2e-3)

    # 3) bf16 output (halves writeback when the consumer tolerates it).
    out_b = jax.block_until_ready(
        netG2_att_forward(z, x, params, out_dtype=jnp.bfloat16)
    )
    assert out_b.dtype == jnp.bfloat16
    assert jnp.allclose(out_b.astype(jnp.float32), ref_bf16, atol=5e-2, rtol=5e-2)

    print("KERNEL_OK")
</pallas_src>

<mosaic_0001>
module attributes {stable_mosaic.version = 11 : i64} {
  func.func @_mlp_kernel(%arg0: i32, %arg1: memref<16x32xf32, #tpu.memory_space<vmem>>, %arg2: memref<16x128xf32, #tpu.memory_space<vmem>>, %arg3: memref<32x256xbf16, #tpu.memory_space<vmem>>, %arg4: memref<128x256xbf16, #tpu.memory_space<vmem>>, %arg5: memref<1x256xf32, #tpu.memory_space<vmem>>, %arg6: memref<256x128xbf16, #tpu.memory_space<vmem>>, %arg7: memref<1x128xf32, #tpu.memory_space<vmem>>, %arg8: memref<16x128xf32, #tpu.memory_space<vmem>>) attributes {dimension_semantics = [#tpu.dimension_semantics<parallel>], iteration_bounds = array<i64: 2>, scalar_prefetch = 0 : i64, scratch_operands = 0 : i64, tpu.core_type = #tpu.core_type<tc>, window_params = [{transform_indices = @transform_0, window_bounds = array<i64: 16, 32>}, {transform_indices = @transform_1, window_bounds = array<i64: 16, 128>}, {pipeline_mode = #tpu.pipeline_mode<synchronous>, transform_indices = @transform_2, window_bounds = array<i64: 32, 256>}, {pipeline_mode = #tpu.pipeline_mode<synchronous>, transform_indices = @transform_3, window_bounds = array<i64: 128, 256>}, {pipeline_mode = #tpu.pipeline_mode<synchronous>, transform_indices = @transform_4, window_bounds = array<i64: 1, 256>}, {pipeline_mode = #tpu.pipeline_mode<synchronous>, transform_indices = @transform_5, window_bounds = array<i64: 256, 128>}, {pipeline_mode = #tpu.pipeline_mode<synchronous>, transform_indices = @transform_6, window_bounds = array<i64: 1, 128>}, {transform_indices = @transform_7, window_bounds = array<i64: 16, 128>}]} {
    %c0 = arith.constant 0 : index
    %c0_0 = arith.constant 0 : index
    %0 = vector.load %arg1[%c0, %c0_0] : memref<16x32xf32, #tpu.memory_space<vmem>>, vector<16x32xf32>
    %1 = arith.truncf %0 : vector<16x32xf32> to vector<16x32xbf16>
    %c0_1 = arith.constant 0 : index
    %c0_2 = arith.constant 0 : index
    %2 = vector.load %arg2[%c0_1, %c0_2] : memref<16x128xf32, #tpu.memory_space<vmem>>, vector<16x128xf32>
    %3 = arith.truncf %2 : vector<16x128xf32> to vector<16x128xbf16>
    %c0_3 = arith.constant 0 : index
    %c0_4 = arith.constant 0 : index
    %4 = vector.load %arg3[%c0_3, %c0_4] : memref<32x256xbf16, #tpu.memory_space<vmem>>, vector<32x256xbf16>
    %cst = arith.constant dense<0.000000e+00> : vector<16x256xf32>
    %5 = tpu.matmul %1, %4, %cst {dimension_numbers = #tpu.dot_dimension_numbers<[1], [0], [0], [1], [0, 0, 1, 1], [], []>} : vector<16x32xbf16>, vector<32x256xbf16>, vector<16x256xf32> -> vector<16x256xf32>
    %c0_5 = arith.constant 0 : index
    %c0_6 = arith.constant 0 : index
    %6 = vector.load %arg4[%c0_5, %c0_6] : memref<128x256xbf16, #tpu.memory_space<vmem>>, vector<128x256xbf16>
    %cst_7 = arith.constant dense<0.000000e+00> : vector<16x256xf32>
    %7 = tpu.matmul %3, %6, %cst_7 {dimension_numbers = #tpu.dot_dimension_numbers<[1], [0], [0], [1], [0, 0, 1, 1], [], []>} : vector<16x128xbf16>, vector<128x256xbf16>, vector<16x256xf32> -> vector<16x256xf32>
    %8 = arith.addf %5, %7 : vector<16x256xf32>
    %c0_8 = arith.constant 0 : index
    %c0_9 = arith.constant 0 : index
    %9 = vector.load %arg5[%c0_8, %c0_9] : memref<1x256xf32, #tpu.memory_space<vmem>>, vector<1x256xf32>
    %10 = vector.broadcast %9 : vector<1x256xf32> to vector<16x256xf32>
    %11 = arith.addf %8, %10 : vector<16x256xf32>
    %cst_10 = arith.constant 0.000000e+00 : f32
    %12 = vector.broadcast %cst_10 : f32 to vector<16x256xf32>
    %13 = arith.cmpf ogt, %11, %12 : vector<16x256xf32>
    %cst_11 = arith.constant 0.00999999977 : f32
    %14 = vector.broadcast %cst_11 : f32 to vector<16x256xf32>
    %15 = arith.mulf %14, %11 : vector<16x256xf32>
    %16 = arith.select %13, %11, %15 : vector<16x256xi1>, vector<16x256xf32>
    %17 = arith.truncf %16 : vector<16x256xf32> to vector<16x256xbf16>
    %c0_12 = arith.constant 0 : index
    %c0_13 = arith.constant 0 : index
    %18 = vector.load %arg6[%c0_12, %c0_13] : memref<256x128xbf16, #tpu.memory_space<vmem>>, vector<256x128xbf16>
    %cst_14 = arith.constant dense<0.000000e+00> : vector<16x128xf32>
    %19 = tpu.matmul %17, %18, %cst_14 {dimension_numbers = #tpu.dot_dimension_numbers<[1], [0], [0], [1], [0, 0, 1, 1], [], []>} : vector<16x256xbf16>, vector<256x128xbf16>, vector<16x128xf32> -> vector<16x128xf32>
    %c0_15 = arith.constant 0 : index
    %c0_16 = arith.constant 0 : index
    %20 = vector.load %arg7[%c0_15, %c0_16] : memref<1x128xf32, #tpu.memory_space<vmem>>, vector<1x128xf32>
    %21 = vector.broadcast %20 : vector<1x128xf32> to vector<16x128xf32>
    %22 = arith.addf %19, %21 : vector<16x128xf32>
    %c0_17 = arith.constant 0 : index
    %c0_18 = arith.constant 0 : index
    %23 = vector.load %arg8[%c0_17, %c0_18] : memref<16x128xf32, #tpu.memory_space<vmem>>, vector<16x128xf32>
    tpu.vector_store %arg8[%c0_17, %c0_18], %22 {strides = array<i32>} : memref<16x128xf32, #tpu.memory_space<vmem>>, vector<16x128xf32>,
    return
  }
  func.func @transform_0(%arg0: i32) -> (i32, i32) {
    %c0_i32 = arith.constant 0 : i32
    %c0_i32_0 = arith.constant 0 : i32
    return %arg0, %c0_i32 : i32, i32
  }
  func.func @transform_1(%arg0: i32) -> (i32, i32) {
    %c0_i32 = arith.constant 0 : i32
    %c0_i32_0 = arith.constant 0 : i32
    return %arg0, %c0_i32 : i32, i32
  }
  func.func @transform_2(%arg0: i32) -> (i32, i32) {
    %c0_i32 = arith.constant 0 : i32
    %c0_i32_0 = arith.constant 0 : i32
    %c0_i32_1 = arith.constant 0 : i32
    return %c0_i32, %c0_i32_0 : i32, i32
  }
  func.func @transform_3(%arg0: i32) -> (i32, i32) {
    %c0_i32 = arith.constant 0 : i32
    %c0_i32_0 = arith.constant 0 : i32
    %c0_i32_1 = arith.constant 0 : i32
    return %c0_i32, %c0_i32_0 : i32, i32
  }
  func.func @transform_4(%arg0: i32) -> (i32, i32) {
    %c0_i32 = arith.constant 0 : i32
    %c0_i32_0 = arith.constant 0 : i32
    %c0_i32_1 = arith.constant 0 : i32
    return %c0_i32, %c0_i32_0 : i32, i32
  }
  func.func @transform_5(%arg0: i32) -> (i32, i32) {
    %c0_i32 = arith.constant 0 : i32
    %c0_i32_0 = arith.constant 0 : i32
    %c0_i32_1 = arith.constant 0 : i32
    return %c0_i32, %c0_i32_0 : i32, i32
  }
  func.func @transform_6(%arg0: i32) -> (i32, i32) {
    %c0_i32 = arith.constant 0 : i32
    %c0_i32_0 = arith.constant 0 : i32
    %c0_i32_1 = arith.constant 0 : i32
    return %c0_i32, %c0_i32_0 : i32, i32
  }
  func.func @transform_7(%arg0: i32) -> (i32, i32) {
    %c0_i32 = arith.constant 0 : i32
    %c0_i32_0 = arith.constant 0 : i32
    return %arg0, %c0_i32 : i32, i32
  }
}

</mosaic_0001>

<llo_original>
// kernel: tpu_custom_call.1
$region0: #{tpu_custom_call.1}
  #allocation0 [shape = 'u32[]', space=smem, size = 0x4, offset = 0x4, fixed_abs, tag = 'smem constant byte address 0x4 - core index']
  #allocation1 [shape = 'u32[72,128]{1,0:T(1,128)}', space=vmem, size = 0x9000, scoped, tag = 'internal scratch']
  %s0 = inlined_call_operand.hbm [shape: f32[20,32], index: 0, kind: input, shape index: {}]
  %s1 = inlined_call_operand.hbm [shape: f32[20,128], index: 1, kind: input, shape index: {}]
  %s2 = inlined_call_operand.hbm [shape: bf16[32,256], index: 2, kind: input, shape index: {}]
  %s3 = inlined_call_operand.hbm [shape: bf16[128,256], index: 3, kind: input, shape index: {}]
  %s4 = inlined_call_operand.vmem [shape: f32[1,256], index: 4, kind: input, shape index: {}]
  %s5 = inlined_call_operand.hbm [shape: bf16[256,128], index: 5, kind: input, shape index: {}]
  %s6 = inlined_call_operand.vmem [shape: f32[1,128], index: 6, kind: input, shape index: {}]
  %s7 = inlined_call_operand.hbm [shape: f32[20,128], index: 7, kind: output, shape index: {}]
  %s8 = sld [smem:[#allocation0]]
  $region81: #{tpu_custom_call.1} parent=0
    _
  %s10 = ssub.s32 1, %s8
  %s11 = scalar_select 0, %s10, %s8
  $region1: #{tpu_custom_call.1} parent=0
    #allocation2 [shape = 'u8[16384]{0}', space=vmem, size = 0x4000, scoped, tag = 'input window, operand 0']
    #allocation3 [shape = 's32[2]{0}', space=sflag, size = 0x8, scoped, tag = 'scoped memory for tpu_custom_call.1']
    #allocation4 [shape = 's32[2]{0}', space=sflag, size = 0x8, scoped, tag = 'scoped memory for tpu_custom_call.1']
    #allocation5 [shape = 'u8[16384]{0}', space=vmem, size = 0x4000, scoped, tag = 'input window, operand 1']
    #allocation6 [shape = 's32[2]{0}', space=sflag, size = 0x8, scoped, tag = 'scoped memory for tpu_custom_call.1']
    #allocation7 [shape = 'u8[16384]{0}', space=vmem, size = 0x4000, scoped, tag = 'input window, operand 2, single buffered']
    #allocation8 [shape = 'u8[65536]{0}', space=vmem, size = 0x10000, scoped, tag = 'input window, operand 3, single buffered']
    #allocation9 [shape = 's32[1]{0}', space=sflag, size = 0x4, scoped, tag = 'scoped memory for tpu_custom_call.1']
    #allocation10 [shape = 'u8[65536]{0}', space=vmem, size = 0x10000, scoped, tag = 'input window, operand 5, single buffered']
    #allocation11 [shape = 'u8[16384]{0}', space=vmem, size = 0x4000, scoped, tag = 'output window, operand 0']
    %12 = vsyncpa [#allocation3], 0
    %s13 = scalar_lea.sflag [#allocation3], 1
    %14 = vsyncpa %s13, 0
    %15 = vsyncpa [#allocation6], 0
    %s16 = scalar_lea.sflag [#allocation6], 1
    %17 = vsyncpa %s16, 0
    %18 = vsyncpa [#allocation9], 0
    %19 = vsyncpa [#allocation4], 0
    %s20 = scalar_lea.sflag [#allocation4], 1
    %21 = vsyncpa %s20, 0
    loop: start=0, step=1, limit=4
    $region2: #{tpu_custom_call.1} parent=1 // loop_pre_header
      _
    $region3: #{tpu_custom_call.1} parent=1 // loop_header
      %s23 = sphi 0, %s27
      %p24 = scmp.ge.s32.totalorder %s23, 4
      %s33 = sphi 0, %s35
      %s36 = sphi 0, %s33
      %s37 = sphi 0, %s36
      %s53 = sphi 0, %s37
      %s59 = sphi 0, %s61
      %s62 = sphi 0, %s59
      %s63 = sphi 0, %s62
      %s79 = sphi 0, %s63
      %s83 = sphi 0, %s83
      %s85 = sphi 0, %s83
      %s86 = sphi 0, %s85
      %s100 = sphi 0, %s86
      %s104 = sphi 0, %s104
      %s106 = sphi 0, %s104
      %s107 = sphi 0, %s106
      %s121 = sphi 0, %s107
      %s125 = sphi 0, %s125
      %s127 = sphi 0, %s125
      %s128 = sphi 0, %s127
      %s142 = sphi 0, %s128
      %s146 = sphi 0, %s146
      %s148 = sphi 0, %s146
      %s149 = sphi 0, %s148
      %s163 = sphi 0, %s149
      %s167 = sphi 0, %s167
      %s169 = sphi 0, %s167
      %s170 = sphi 0, %s169
      %s184 = sphi 0, %s170
      %s190 = sphi 0, %s192
      %s193 = sphi 0, %s190
      %s194 = sphi 0, %s193
      %s210 = sphi 0, %s194
    $region4: #{tpu_custom_call.1} parent=1 // loop_header_branch
      %26 = sbr.rel (%p24) target = $region8
    $region5: #{tpu_custom_call.1} parent=1 // loop_body
      %s28 = ssub.s32 %s23, 1
      %s29 = ssub.s32 %s23, 2
      %s30 = sadd.s32 %s23, 1
      %s31 = ssub.s32 %s23, %s30
      %p32 = scmp.eq.s32.totalorder %s31, 0
      %s34 = sadd.s32 %s33, 1
      %s35 = scalar_select %p32, %s33, %s34
      %p38 = pneg %p32
      %p39 = scmp.eq.s32.totalorder %s23, 1
      %p40 = por %p38, %p39
      %p41 = scmp.ne.s32.totalorder %s33, %s36
      %p42 = scmp.eq.s32.totalorder %s23, 0
      %p43 = por %p41, %p42
      %p44 = scmp.ne.s32.totalorder %s33, %s36
      %p45 = scmp.eq.s32.totalorder %s28, 1
      %p46 = por %p44, %p45
      %p47 = scmp.ne.s32.totalorder %s36, %s37
      %p48 = scmp.eq.s32.totalorder %s28, 0
      %p49 = por %p47, %p48
      %p50 = scmp.ne.s32.totalorder %s36, %s37
      %p51 = scmp.eq.s32.totalorder %s29, 1
      %p52 = por %p50, %p51
      %p54 = scmp.ne.s32.totalorder %s37, %s53
      %p55 = scmp.eq.s32.totalorder %s29, 0
      %p56 = por %p54, %p55
      %s57 = ssub.s32 %s23, %s30
      %p58 = scmp.eq.s32.totalorder %s57, 0
      %s60 = sadd.s32 %s59, 1
      %s61 = scalar_select %p58, %s59, %s60
      %p64 = pneg %p58
      %p65 = scmp.eq.s32.totalorder %s23, 1
      %p66 = por %p64, %p65
      %p67 = scmp.ne.s32.totalorder %s59, %s62
      %p68 = scmp.eq.s32.totalorder %s23, 0
      %p69 = por %p67, %p68
      %p70 = scmp.ne.s32.totalorder %s59, %s62
      %p71 = scmp.eq.s32.totalorder %s28, 1
      %p72 = por %p70, %p71
      %p73 = scmp.ne.s32.totalorder %s62, %s63
      %p74 = scmp.eq.s32.totalorder %s28, 0
      %p75 = por %p73, %p74
      %p76 = scmp.ne.s32.totalorder %s62, %s63
      %p77 = scmp.eq.s32.totalorder %s29, 1
      %p78 = por %p76, %p77
      %p80 = scmp.ne.s32.totalorder %s63, %s79
      %p81 = scmp.eq.s32.totalorder %s29, 0
      %p82 = por %p80, %p81
      %s84 = sadd.s32 %s83, 1
      %p87 = scmp.eq.s32.totalorder %s23, 1
      %p88 = scmp.ne.s32.totalorder %s83, %s85
      %p89 = scmp.eq.s32.totalorder %s23, 0
      %p90 = por %p88, %p89
      %p91 = scmp.ne.s32.totalorder %s83, %s85
      %p92 = scmp.eq.s32.totalorder %s28, 1
      %p93 = por %p91, %p92
      %p94 = scmp.ne.s32.totalorder %s85, %s86
      %p95 = scmp.eq.s32.totalorder %s28, 0
      %p96 = por %p94, %p95
      %p97 = scmp.ne.s32.totalorder %s85, %s86
      %p98 = scmp.eq.s32.totalorder %s29, 1
      %p99 = por %p97, %p98
      %p101 = scmp.ne.s32.totalorder %s86, %s100
      %p102 = scmp.eq.s32.totalorder %s29, 0
      %p103 = por %p101, %p102
      %s105 = sadd.s32 %s104, 1
      %p108 = scmp.eq.s32.totalorder %s23, 1
      %p109 = scmp.ne.s32.totalorder %s104, %s106
      %p110 = scmp.eq.s32.totalorder %s23, 0
      %p111 = por %p109, %p110
      %p112 = scmp.ne.s32.totalorder %s104, %s106
      %p113 = scmp.eq.s32.totalorder %s28, 1
      %p114 = por %p112, %p113
      %p115 = scmp.ne.s32.totalorder %s106, %s107
      %p116 = scmp.eq.s32.totalorder %s28, 0
      %p117 = por %p115, %p116
      %p118 = scmp.ne.s32.totalorder %s106, %s107
      %p119 = scmp.eq.s32.totalorder %s29, 1
      %p120 = por %p118, %p119
      %p122 = scmp.ne.s32.totalorder %s107, %s121
      %p123 = scmp.eq.s32.totalorder %s29, 0
      %p124 = por %p122, %p123
      %s126 = sadd.s32 %s125, 1
      %p129 = scmp.eq.s32.totalorder %s23, 1
      %p130 = scmp.ne.s32.totalorder %s125, %s127
      %p131 = scmp.eq.s32.totalorder %s23, 0
      %p132 = por %p130, %p131
      %p133 = scmp.ne.s32.totalorder %s125, %s127
      %p134 = scmp.eq.s32.totalorder %s28, 1
      %p135 = por %p133, %p134
      %p136 = scmp.ne.s32.totalorder %s127, %s128
      %p137 = scmp.eq.s32.totalorder %s28, 0
      %p138 = por %p136, %p137
      %p139 = scmp.ne.s32.totalorder %s127, %s128
      %p140 = scmp.eq.s32.totalorder %s29, 1
      %p141 = por %p139, %p140
      %p143 = scmp.ne.s32.totalorder %s128, %s142
      %p144 = scmp.eq.s32.totalorder %s29, 0
      %p145 = por %p143, %p144
      %s147 = sadd.s32 %s146, 1
      %p150 = scmp.eq.s32.totalorder %s23, 1
      %p151 = scmp.ne.s32.totalorder %s146, %s148
      %p152 = scmp.eq.s32.totalorder %s23, 0
      %p153 = por %p151, %p152
      %p154 = scmp.ne.s32.totalorder %s146, %s148
      %p155 = scmp.eq.s32.totalorder %s28, 1
      %p156 = por %p154, %p155
      %p157 = scmp.ne.s32.totalorder %s148, %s149
      %p158 = scmp.eq.s32.totalorder %s28, 0
      %p159 = por %p157, %p158
      %p160 = scmp.ne.s32.totalorder %s148, %s149
      %p161 = scmp.eq.s32.totalorder %s29, 1
      %p162 = por %p160, %p161
      %p164 = scmp.ne.s32.totalorder %s149, %s163
      %p165 = scmp.eq.s32.totalorder %s29, 0
      %p166 = por %p164, %p165
      %s168 = sadd.s32 %s167, 1
      %p171 = scmp.eq.s32.totalorder %s23, 1
      %p172 = scmp.ne.s32.totalorder %s167, %s169
      %p173 = scmp.eq.s32.totalorder %s23, 0
      %p174 = por %p172, %p173
      %p175 = scmp.ne.s32.totalorder %s167, %s169
      %p176 = scmp.eq.s32.totalorder %s28, 1
      %p177 = por %p175, %p176
      %p178 = scmp.ne.s32.totalorder %s169, %s170
      %p179 = scmp.eq.s32.totalorder %s28, 0
      %p180 = por %p178, %p179
      %p181 = scmp.ne.s32.totalorder %s169, %s170
      %p182 = scmp.eq.s32.totalorder %s29, 1
      %p183 = por %p181, %p182
      %p185 = scmp.ne.s32.totalorder %s170, %s184
      %p186 = scmp.eq.s32.totalorder %s29, 0
      %p187 = por %p185, %p186
      %s188 = ssub.s32 %s23, %s30
      %p189 = scmp.eq.s32.totalorder %s188, 0
      %s191 = sadd.s32 %s190, 1
      %s192 = scalar_select %p189, %s190, %s191
      %p195 = pneg %p189
      %p196 = scmp.eq.s32.totalorder %s23, 1
      %p197 = por %p195, %p196
      %p198 = scmp.ne.s32.totalorder %s190, %s193
      %p199 = scmp.eq.s32.totalorder %s23, 0
      %p200 = por %p198, %p199
      %p201 = scmp.ne.s32.totalorder %s190, %s193
      %p202 = scmp.eq.s32.totalorder %s28, 1
      %p203 = por %p201, %p202
      %p204 = scmp.ne.s32.totalorder %s193, %s194
      %p205 = scmp.eq.s32.totalorder %s28, 0
      %p206 = por %p204, %p205
      %p207 = scmp.ne.s32.totalorder %s193, %s194
      %p208 = scmp.eq.s32.totalorder %s29, 1
      %p209 = por %p207, %p208
      %p211 = scmp.ne.s32.totalorder %s194, %s210
      %p212 = scmp.eq.s32.totalorder %s29, 0
      %p213 = por %p211, %p212
      %p214 = scmp.le.s32.totalorder 1, %s23
      %p215 = scmp.lt.s32.totalorder %s23, 3
      %p216 = pnand %p214, %p215
      %p217 = pneg %p216
      // Predicated region
      $region9: #{tpu_custom_call.1} parent=5 // pred_check
        _
      $region10: #{tpu_custom_call.1} parent=5 // pred_check_branch
        %219 = sbr.rel (%p216) target = $region12
      $region11: #{tpu_custom_call.1} parent=5 // pred_region
        %s220 = ssub.s32 %s23, 1
        // Predicated region
        $region13: #{tpu_custom_call.1} parent=11 // pred_check
          %p221 = pneg %p96
        $region14: #{tpu_custom_call.1} parent=11 // pred_check_branch
          %223 = sbr.rel (%p221) target = $region16
        $region15: #{tpu_custom_call.1} parent=11 // pred_region
          %225 = vsyncadd [#allocation6], 0
          %s226 = sshll.u32 %s2, 4
          %s227 = int_to_ptr.hbm [resolvable:$true] %s226
          %s228 = sshll.u32 [#allocation7], 4
          %s229 = int_to_ptr.vmem [resolvable:$true] %s228
          %234 = dma.hbm_to_vmem [thread:$0]  %s227, 512, %s229, [#allocation6], 128, 128, 8
        $region16: #{tpu_custom_call.1} parent=11 // pred_fallthru
          _
        // Predicated region
        $region17: #{tpu_custom_call.1} parent=11 // pred_check
          %p235 = pneg %p117
        $region18: #{tpu_custom_call.1} parent=11 // pred_check_branch
          %237 = sbr.rel (%p235) target = $region20
        $region19: #{tpu_custom_call.1} parent=11 // pred_region
          %239 = vsyncadd [#allocation9], 0
          %s240 = sshll.u32 %s3, 4
          %s241 = int_to_ptr.hbm [resolvable:$true] %s240
          %s242 = sshll.u32 [#allocation8], 4
          %s243 = int_to_ptr.vmem [resolvable:$true] %s242
          %248 = dma.hbm_to_vmem [thread:$0]  %s241, 2048, %s243, [#allocation9], 128, 128, 8
        $region20: #{tpu_custom_call.1} parent=11 // pred_fallthru
          _
        // Predicated region
        $region21: #{tpu_custom_call.1} parent=11 // pred_check
          %p249 = pneg %p138
        $region22: #{tpu_custom_call.1} parent=11 // pred_check_branch
          %251 = sbr.rel (%p249) target = $region24
        $region23: #{tpu_custom_call.1} parent=11 // pred_region
          _
        $region24: #{tpu_custom_call.1} parent=11 // pred_fallthru
          _
        // Predicated region
        $region25: #{tpu_custom_call.1} parent=11 // pred_check
          %p252 = pneg %p159
        $region26: #{tpu_custom_call.1} parent=11 // pred_check_branch
          %254 = sbr.rel (%p252) target = $region28
        $region27: #{tpu_custom_call.1} parent=11 // pred_region
          %256 = vsyncadd [#allocation9], 0
          %s257 = sshll.u32 %s5, 4
          %s258 = int_to_ptr.hbm [resolvable:$true] %s257
          %s259 = sshll.u32 [#allocation10], 4
          %s260 = int_to_ptr.vmem [resolvable:$true] %s259
          %265 = dma.hbm_to_vmem [thread:$0]  %s258, 2048, %s260, [#allocation9], 64, 64, 4
        $region28: #{tpu_custom_call.1} parent=11 // pred_fallthru
          _
        // Predicated region
        $region29: #{tpu_custom_call.1} parent=11 // pred_check
          %p266 = pneg %p180
        $region30: #{tpu_custom_call.1} parent=11 // pred_check_branch
          %268 = sbr.rel (%p266) target = $region32
        $region31: #{tpu_custom_call.1} parent=11 // pred_region
          _
        $region32: #{tpu_custom_call.1} parent=11 // pred_fallthru
          _
      $region12: #{tpu_custom_call.1} parent=5 // pred_fallthru
        _
      %p269 = scmp.lt.s32.totalorder %s23, 2
      // Predicated region
      $region33: #{tpu_custom_call.1} parent=5 // pred_check
        %p270 = pneg %p269
      $region34: #{tpu_custom_call.1} parent=5 // pred_check_branch
        %272 = sbr.rel (%p270) target = $region36
      $region35: #{tpu_custom_call.1} parent=5 // pred_region
        // Predicated region
        $region37: #{tpu_custom_call.1} parent=35 // pred_check
          %p273 = pneg %p43
        $region38: #{tpu_custom_call.1} parent=35 // pred_check_branch
          %275 = sbr.rel (%p273) target = $region40
        $region39: #{tpu_custom_call.1} parent=35 // pred_region
          %s276 = sand.u32 %s33, 1
          %s277 = scalar_lea.sflag [#allocation3], %s276
          %s278 = sand.u32 %s33, 1
          %s279 = smul.addr %s278, 16
          %s280 = scalar_lea.vmem [#allocation2], %s279
          %s281 = smul.u32 2, %s23
          %s282 = ssub.s32 3, %s281
          %p283 = scmp.lt.s32.totalorder %s282, 2
          %s284 = scalar_select %p283, %s282, 2
          %s285 = smul.u32 8, %s284
          %s286 = ssub.s32 16, %s285
          %s287 = sshll.u32 %s286, 4
          %288 = vsyncadd %s277, %s287
          %p289 = scmp.ne.s32.totalorder 0, %s285
          %s290 = smul.addr %s281, 8
          %s291 = scalar_lea.hbm %s0, %s290
          %s292 = smul.u32 8, %s284
          %s293 = sshll.u32 %s291, 4
          %s294 = int_to_ptr.hbm [resolvable:$true] %s293
          %s295 = sshll.u32 %s280, 4
          %s296 = int_to_ptr.vmem [resolvable:$true] %s295
          %s297 = sshll.u32 %s292, 4
          %301 = dma.hbm_to_vmem [thread:$0]  (%p289), %s294, %s297, %s296, %s277, 128, 128, 8
        $region40: #{tpu_custom_call.1} parent=35 // pred_fallthru
          _
        // Predicated region
        $region41: #{tpu_custom_call.1} parent=35 // pred_check
          %p302 = pneg %p69
        $region42: #{tpu_custom_call.1} parent=35 // pred_check_branch
          %304 = sbr.rel (%p302) target = $region44
        $region43: #{tpu_custom_call.1} parent=35 // pred_region
          %s305 = sand.u32 %s23, 1
          %s306 = scalar_lea.sflag [#allocation6], %s305
          %s307 = sand.u32 %s59, 1
          %s308 = smul.addr %s307, 16
          %s309 = scalar_lea.vmem [#allocation5], %s308
          %s310 = smul.u32 2, %s23
          %s311 = ssub.s32 3, %s310
          %p312 = scmp.lt.s32.totalorder %s311, 2
          %s313 = scalar_select %p312, %s311, 2
          %s314 = smul.u32 8, %s313
          %s315 = ssub.s32 16, %s314
          %s316 = sshll.u32 %s315, 4
          %317 = vsyncadd %s306, %s316
          %p318 = scmp.ne.s32.totalorder 0, %s314
          %s319 = smul.addr %s310, 8
          %s320 = scalar_lea.hbm %s1, %s319
          %s321 = smul.u32 8, %s313
          %s322 = sshll.u32 %s320, 4
          %s323 = int_to_ptr.hbm [resolvable:$true] %s322
          %s324 = sshll.u32 %s309, 4
          %s325 = int_to_ptr.vmem [resolvable:$true] %s324
          %s326 = sshll.u32 %s321, 4
          %330 = dma.hbm_to_vmem [thread:$0]  (%p318), %s323, %s326, %s325, %s306, 128, 128, 8
        $region44: #{tpu_custom_call.1} parent=35 // pred_fallthru
          _
      $region36: #{tpu_custom_call.1} parent=5 // pred_fallthru
        _
      %p331 = scmp.le.s32.totalorder 1, %s23
      %p332 = scmp.lt.s32.totalorder %s23, 3
      %p333 = pnand %p331, %p332
      %p334 = pneg %p333
      // Predicated region
      $region45: #{tpu_custom_call.1} parent=5 // pred_check
        _
      $region46: #{tpu_custom_call.1} parent=5 // pred_check_branch
        %336 = sbr.rel (%p333) target = $region48
      $region47: #{tpu_custom_call.1} parent=5 // pred_region
        %s337 = ssub.s32 %s23, 1
        %s338 = sand.u32 %s36, 1
        %s339 = scalar_lea.sflag [#allocation3], %s338
        %s340 = sand.u32 %s36, 1
        %s341 = smul.addr %s340, 16
        %s342 = scalar_lea.vmem [#allocation2], %s341
        // Predicated region
        $region49: #{tpu_custom_call.1} parent=47 // pred_check
          %p343 = pneg %p49
        $region50: #{tpu_custom_call.1} parent=47 // pred_check_branch
          %345 = sbr.rel (%p343) target = $region52
        $region51: #{tpu_custom_call.1} parent=47 // pred_region
          %347 = dma.done %s339, 256
        $region52: #{tpu_custom_call.1} parent=47 // pred_fallthru
          _
        %s348 = sand.u32 %s28, 1
        %s349 = scalar_lea.sflag [#allocation6], %s348
        %s350 = sand.u32 %s62, 1
        %s351 = smul.addr %s350, 16
        %s352 = scalar_lea.vmem [#allocation5], %s351
        // Predicated region
        $region53: #{tpu_custom_call.1} parent=47 // pred_check
          %p353 = pneg %p75
        $region54: #{tpu_custom_call.1} parent=47 // pred_check_branch
          %355 = sbr.rel (%p353) target = $region56
        $region55: #{tpu_custom_call.1} parent=47 // pred_region
          %357 = dma.done %s349, 256
        $region56: #{tpu_custom_call.1} parent=47 // pred_fallthru
          _
        // Predicated region
        $region57: #{tpu_custom_call.1} parent=47 // pred_check
          %p358 = pneg %p96
        $region58: #{tpu_custom_call.1} parent=47 // pred_check_branch
          %360 = sbr.rel (%p358) target = $region60
        $region59: #{tpu_custom_call.1} parent=47 // pred_region
          %362 = dma.done [#allocation6], 512
        $region60: #{tpu_custom_call.1} parent=47 // pred_fallthru
          _
        // Predicated region
        $region61: #{tpu_custom_call.1} parent=47 // pred_check
          %p363 = pneg %p117
        $region62: #{tpu_custom_call.1} parent=47 // pred_check_branch
          %365 = sbr.rel (%p363) target = $region64
        $region63: #{tpu_custom_call.1} parent=47 // pred_region
          %367 = dma.done [#allocation9], 2048
        $region64: #{tpu_custom_call.1} parent=47 // pred_fallthru
          _
        // Predicated region
        $region65: #{tpu_custom_call.1} parent=47 // pred_check
          %p368 = pneg %p159
        $region66: #{tpu_custom_call.1} parent=47 // pred_check_branch
          %370 = sbr.rel (%p368) target = $region68
        $region67: #{tpu_custom_call.1} parent=47 // pred_region
          %372 = dma.done [#allocation9], 2048
        $region68: #{tpu_custom_call.1} parent=47 // pred_fallthru
          _
        %s373 = sand.u32 %s36, 1
        %s374 = scalar_lea.sflag [#allocation3], %s373
        %s375 = sand.u32 %s36, 1
        %s376 = smul.addr %s375, 16
        %s377 = scalar_lea.vmem [#allocation2], %s376
        %p378 = pneg %p49
        %p379 = pneg %p46
        %s380 = sand.u32 %s28, 1
        %s381 = scalar_lea.sflag [#allocation6], %s380
        %s382 = sand.u32 %s62, 1
        %s383 = smul.addr %s382, 16
        %s384 = scalar_lea.vmem [#allocation5], %s383
        %p385 = pneg %p75
        %p386 = pneg %p72
        %p387 = pneg %p96
        %p388 = pneg %p93
        %p389 = pneg %p117
        %p390 = pneg %p114
        %p391 = pneg %p138
        %p392 = pneg %p135
        %p393 = pneg %p159
        %p394 = pneg %p156
        %p395 = pneg %p180
        %p396 = pneg %p177
        %p397 = pneg %p206
        %p398 = pneg %p203
        %s399 = sand.u32 %s193, 1
        %s400 = scalar_lea.sflag [#allocation4], %s399
        %s401 = sand.u32 %s193, 1
        %s402 = smul.addr %s401, 16
        %s403 = scalar_lea.vmem [#allocation11], %s402
        %s404 = smul.u32 2, %s28
        %s405 = ssub.s32 3, %s404
        %p406 = scmp.lt.s32.totalorder %s405, 2
        %s407 = scalar_select %p406, %s405, 2
        %s408 = smul.u32 8, %s407
        %s409 = smul.u32 2, %s28
        %s410 = ssub.s32 3, %s409
        %p411 = scmp.lt.s32.totalorder %s410, 2
        %s412 = scalar_select %p411, %s410, 2
        %s413 = smul.u32 8, %s412
        %s414 = smul.u32 2, %s28
        %s415 = ssub.s32 3, %s414
        %p416 = scmp.lt.s32.totalorder %s415, 2
        %s417 = scalar_select %p416, %s415, 2
        %s418 = smul.u32 8, %s417
        %v420 = vld [vmem:[%s342] sm:$0xff]
        %v421 = vld [vmem:[%s342 + $0x8] sm:$0xff]
        %v422 = vpack.c.bf16 %v421, %v420
        %v423 = vld [vmem:[%s352] sm:$0xff]
        %v424 = vld [vmem:[%s352 + $0x8] sm:$0xff]
        %v425 = vpack.c.bf16 %v424, %v423
        %v426 = vld [vmem:[#allocation7] sm:$0xff]
        %v427 = vld [vmem:[#allocation7 + $0x8] sm:$0xff]
        %v428 = vld [vmem:[#allocation7 + $0x10] sm:$0xff]
        %v429 = vld [vmem:[#allocation7 + $0x18] sm:$0xff]
        %v430 = vld [vmem:[#allocation8] sm:$0xff]
        %v431 = vld [vmem:[#allocation8 + $0x8] sm:$0xff]
        %v432 = vld [vmem:[#allocation8 + $0x10] sm:$0xff]
        %v433 = vld [vmem:[#allocation8 + $0x18] sm:$0xff]
        %v434 = vld [vmem:[#allocation8 + $0x20] sm:$0xff]
        %v435 = vld [vmem:[#allocation8 + $0x28] sm:$0xff]
        %v436 = vld [vmem:[#allocation8 + $0x30] sm:$0xff]
        %v437 = vld [vmem:[#allocation8 + $0x38] sm:$0xff]
        %v438 = vld [vmem:[#allocation8 + $0x40] sm:$0xff]
        %v439 = vld [vmem:[#allocation8 + $0x48] sm:$0xff]
        %v440 = vld [vmem:[#allocation8 + $0x50] sm:$0xff]
        %v441 = vld [vmem:[#allocation8 + $0x58] sm:$0xff]
        %v442 = vld [vmem:[#allocation8 + $0x60] sm:$0xff]
        %v443 = vld [vmem:[#allocation8 + $0x68] sm:$0xff]
        %v444 = vld [vmem:[#allocation8 + $0x70] sm:$0xff]
        %v445 = vld [vmem:[#allocation8 + $0x78] sm:$0xff]
        %v462 = vunpack.c.l.b16 %v430
        %v463 = vunpack.c.h.b16 %v430
        %v464 = vunpack.c.l.b16 %v431
        %v465 = vunpack.c.h.b16 %v431
        %v466 = vunpack.c.l.b16 %v432
        %v467 = vunpack.c.h.b16 %v432
        %v468 = vunpack.c.l.b16 %v433
        %v469 = vunpack.c.h.b16 %v433
        %v470 = vunpack.c.l.b16 %v434
        %v471 = vunpack.c.h.b16 %v434
        %v472 = vunpack.c.l.b16 %v435
        %v473 = vunpack.c.h.b16 %v435
        %v474 = vunpack.c.l.b16 %v436
        %v475 = vunpack.c.h.b16 %v436
        %v476 = vunpack.c.l.b16 %v437
        %v477 = vunpack.c.h.b16 %v437
        %v478 = vunpack.c.l.b16 %v438
        %v479 = vunpack.c.h.b16 %v438
        %v480 = vunpack.c.l.b16 %v439
        %v481 = vunpack.c.h.b16 %v439
        %v482 = vunpack.c.l.b16 %v440
        %v483 = vunpack.c.h.b16 %v440
        %v484 = vunpack.c.l.b16 %v441
        %v485 = vunpack.c.h.b16 %v441
        %v486 = vunpack.c.l.b16 %v442
        %v487 = vunpack.c.h.b16 %v442
        %v488 = vunpack.c.l.b16 %v443
        %v489 = vunpack.c.h.b16 %v443
        %v490 = vunpack.c.l.b16 %v444
        %v491 = vunpack.c.h.b16 %v444
        %v492 = vunpack.c.l.b16 %v445
        %v493 = vunpack.c.h.b16 %v445
        %v494 = vpack.c.b16 %v464, %v462
        %v495 = vpack.c.b16 %v465, %v463
        %v496 = vpack.c.b16 %v468, %v466
        %v497 = vpack.c.b16 %v469, %v467
        %v498 = vpack.c.b16 %v472, %v470
        %v499 = vpack.c.b16 %v473, %v471
        %v500 = vpack.c.b16 %v476, %v474
        %v501 = vpack.c.b16 %v477, %v475
        %v502 = vpack.c.b16 %v480, %v478
        %v503 = vpack.c.b16 %v481, %v479
        %v504 = vpack.c.b16 %v484, %v482
        %v505 = vpack.c.b16 %v485, %v483
        %v506 = vpack.c.b16 %v488, %v486
        %v507 = vpack.c.b16 %v489, %v487
        %v508 = vpack.c.b16 %v492, %v490
        %v509 = vpack.c.b16 %v493, %v491
        %526 = vmatpush.bf16.msra.mxu0 %v508
        %527 = vmatpush.bf16.msra.mxu0 %v506
        %528 = vmatpush.bf16.msra.mxu0 %v504
        %529 = vmatpush.bf16.msra.mxu0 %v502
        %530 = vmatpush.bf16.msra.mxu0 %v500
        %531 = vmatpush.bf16.msra.mxu0 %v498
        %532 = vmatpush.bf16.msra.mxu0 %v496
        %533 = vmatpush.bf16.msra.mxu0 %v494
        %534 = vmatmul.bf16.gmra.mxu0 %v425
        %v535 = vpop.f32.mrf.mxu0
        %v536 = vadd.f32 0.0, %v535
        %v537 = vpop.f32.mrf.mxu0
        %v538 = vadd.f32 0.0, %v537
        %539 = vdwg.mxu0
        %540 = vmatpush.bf16.msra.mxu0 %v509
        %541 = vmatpush.bf16.msra.mxu0 %v507
        %542 = vmatpush.bf16.msra.mxu0 %v505
        %543 = vmatpush.bf16.msra.mxu0 %v503
        %544 = vmatpush.bf16.msra.mxu0 %v501
        %545 = vmatpush.bf16.msra.mxu0 %v499
        %546 = vmatpush.bf16.msra.mxu0 %v497
        %547 = vmatpush.bf16.msra.mxu0 %v495
        %548 = vmatmul.bf16.gmra.mxu0 %v425
        %v549 = vpop.f32.mrf.mxu0
        %v550 = vadd.f32 0.0, %v549
        %v551 = vpop.f32.mrf.mxu0
        %v552 = vadd.f32 0.0, %v551
        %553 = vdwg.mxu0
        %v558 = vunpack.c.l.b16 %v426
        %v559 = vunpack.c.h.b16 %v426
        %v560 = vunpack.c.l.b16 %v427
        %v561 = vunpack.c.h.b16 %v427
        %v562 = vunpack.c.l.b16 %v428
        %v563 = vunpack.c.h.b16 %v428
        %v564 = vunpack.c.l.b16 %v429
        %v565 = vunpack.c.h.b16 %v429
        %v566 = vpack.c.b16 %v560, %v558
        %v567 = vpack.c.b16 %v561, %v559
        %v568 = vpack.c.b16 %v564, %v562
        %v569 = vpack.c.b16 %v565, %v563
        %vm574 = vcmask 261120
        %v576 = vsel %vm574, %v422, 0
        %578 = vmatpush.bf16.msra.mxu0 0
        %579 = vmatpush.bf16.msra.mxu0 0
        %580 = vmatpush.bf16.msra.mxu0 0
        %581 = vmatpush.bf16.msra.mxu0 0
        %582 = vmatpush.bf16.msra.mxu0 0
        %583 = vmatpush.bf16.msra.mxu0 0
        %584 = vmatpush.bf16.msra.mxu0 %v568
        %585 = vmatpush.bf16.msra.mxu0 %v566
        %586 = vmatmul.bf16.gmra.mxu0 %v576
        %v587 = vpop.f32.mrf.mxu0
        %v588 = vadd.f32 %v536, %v587
        %v589 = vpop.f32.mrf.mxu0
        %v590 = vadd.f32 %v538, %v589
        %591 = vdwg.mxu0
        %592 = vmatpush.bf16.msra.mxu0 0
        %593 = vmatpush.bf16.msra.mxu0 0
        %594 = vmatpush.bf16.msra.mxu0 0
        %595 = vmatpush.bf16.msra.mxu0 0
        %596 = vmatpush.bf16.msra.mxu0 0
        %597 = vmatpush.bf16.msra.mxu0 0
        %598 = vmatpush.bf16.msra.mxu0 %v569
        %599 = vmatpush.bf16.msra.mxu0 %v567
        %600 = vmatmul.bf16.gmra.mxu0 %v576
        %v601 = vpop.f32.mrf.mxu0
        %v602 = vadd.f32 %v550, %v601
        %v603 = vpop.f32.mrf.mxu0
        %v604 = vadd.f32 %v552, %v603
        %605 = vdwg.mxu0
        %v606 = vld [vmem:[%s4] sm:$0x3]
        %v608 = vperm.slane %v606, 0
        %v609 = vperm.slane %v606, 1
        %v612 = vadd.f32 %v588, %v608
        %v613 = vadd.f32 %v602, %v609
        %v614 = vadd.f32 %v590, %v608
        %v615 = vadd.f32 %v604, %v609
        %vm616 = vcmp.gt.f32.partialorder %v612, 0.0
        %vm617 = vcmp.gt.f32.partialorder %v613, 0.0
        %vm618 = vcmp.gt.f32.partialorder %v614, 0.0
        %vm619 = vcmp.gt.f32.partialorder %v615, 0.0
        %v620 = vmul.f32 %v612, 0.01
        %v621 = vmul.f32 %v613, 0.01
        %v622 = vmul.f32 %v614, 0.01
        %v623 = vmul.f32 %v615, 0.01
        %v624 = vsel %vm616, %v612, %v620
        %v625 = vsel %vm617, %v613, %v621
        %v626 = vsel %vm618, %v614, %v622
        %v627 = vsel %vm619, %v615, %v623
        %v628 = vpack.c.bf16 %v626, %v624
        %v629 = vpack.c.bf16 %v627, %v625
        %v630 = vld [vmem:[#allocation10] sm:$0xf]
        %v631 = vld [vmem:[#allocation10 + $0x4] sm:$0xf]
        %v632 = vld [vmem:[#allocation10 + $0x8] sm:$0xf]
        %v633 = vld [vmem:[#allocation10 + $0xc] sm:$0xf]
        %v634 = vld [vmem:[#allocation10 + $0x10] sm:$0xf]
        %v635 = vld [vmem:[#allocation10 + $0x14] sm:$0xf]
        %v636 = vld [vmem:[#allocation10 + $0x18] sm:$0xf]
        %v637 = vld [vmem:[#allocation10 + $0x1c] sm:$0xf]
        %v638 = vld [vmem:[#allocation10 + $0x20] sm:$0xf]
        %v639 = vld [vmem:[#allocation10 + $0x24] sm:$0xf]
        %v640 = vld [vmem:[#allocation10 + $0x28] sm:$0xf]
        %v641 = vld [vmem:[#allocation10 + $0x2c] sm:$0xf]
        %v642 = vld [vmem:[#allocation10 + $0x30] sm:$0xf]
        %v643 = vld [vmem:[#allocation10 + $0x34] sm:$0xf]
        %v644 = vld [vmem:[#allocation10 + $0x38] sm:$0xf]
        %v645 = vld [vmem:[#allocation10 + $0x3c] sm:$0xf]
        %v646 = vld [vmem:[#allocation10 + $0x40] sm:$0xf]
        %v647 = vld [vmem:[#allocation10 + $0x44] sm:$0xf]
        %v648 = vld [vmem:[#allocation10 + $0x48] sm:$0xf]
        %v649 = vld [vmem:[#allocation10 + $0x4c] sm:$0xf]
        %v650 = vld [vmem:[#allocation10 + $0x50] sm:$0xf]
        %v651 = vld [vmem:[#allocation10 + $0x54] sm:$0xf]
        %v652 = vld [vmem:[#allocation10 + $0x58] sm:$0xf]
        %v653 = vld [vmem:[#allocation10 + $0x5c] sm:$0xf]
        %v654 = vld [vmem:[#allocation10 + $0x60] sm:$0xf]
        %v655 = vld [vmem:[#allocation10 + $0x64] sm:$0xf]
        %v656 = vld [vmem:[#allocation10 + $0x68] sm:$0xf]
        %v657 = vld [vmem:[#allocation10 + $0x6c] sm:$0xf]
        %v658 = vld [vmem:[#allocation10 + $0x70] sm:$0xf]
        %v659 = vld [vmem:[#allocation10 + $0x74] sm:$0xf]
        %v660 = vld [vmem:[#allocation10 + $0x78] sm:$0xf]
        %v661 = vld [vmem:[#allocation10 + $0x7c] sm:$0xf]
        %v662 = vld [vmem:[%s6] sm:$0x1]
        %v664 = vperm.slane %v662, 0
        %v698 = vunpack.c.l.b16 %v630
        %v699 = vunpack.c.l.b16 %v631
        %v700 = vunpack.c.l.b16 %v632
        %v701 = vunpack.c.l.b16 %v633
        %v702 = vunpack.c.l.b16 %v634
        %v703 = vunpack.c.l.b16 %v635
        %v704 = vunpack.c.l.b16 %v636
        %v705 = vunpack.c.l.b16 %v637
        %v706 = vunpack.c.l.b16 %v638
        %v707 = vunpack.c.l.b16 %v639
        %v708 = vunpack.c.l.b16 %v640
        %v709 = vunpack.c.l.b16 %v641
        %v710 = vunpack.c.l.b16 %v642
        %v711 = vunpack.c.l.b16 %v643
        %v712 = vunpack.c.l.b16 %v644
        %v713 = vunpack.c.l.b16 %v645
        %v714 = vunpack.c.l.b16 %v646
        %v715 = vunpack.c.l.b16 %v647
        %v716 = vunpack.c.l.b16 %v648
        %v717 = vunpack.c.l.b16 %v649
        %v718 = vunpack.c.l.b16 %v650
        %v719 = vunpack.c.l.b16 %v651
        %v720 = vunpack.c.l.b16 %v652
        %v721 = vunpack.c.l.b16 %v653
        %v722 = vunpack.c.l.b16 %v654
        %v723 = vunpack.c.l.b16 %v655
        %v724 = vunpack.c.l.b16 %v656
        %v725 = vunpack.c.l.b16 %v657
        %v726 = vunpack.c.l.b16 %v658
        %v727 = vunpack.c.l.b16 %v659
        %v728 = vunpack.c.l.b16 %v660
        %v729 = vunpack.c.l.b16 %v661
        %v730 = vpack.c.b16 %v699, %v698
        %v731 = vpack.c.b16 %v701, %v700
        %v732 = vpack.c.b16 %v703, %v702
        %v733 = vpack.c.b16 %v705, %v704
        %v734 = vpack.c.b16 %v707, %v706
        %v735 = vpack.c.b16 %v709, %v708
        %v736 = vpack.c.b16 %v711, %v710
        %v737 = vpack.c.b16 %v713, %v712
        %v738 = vpack.c.b16 %v715, %v714
        %v739 = vpack.c.b16 %v717, %v716
        %v740 = vpack.c.b16 %v719, %v718
        %v741 = vpack.c.b16 %v721, %v720
        %v742 = vpack.c.b16 %v723, %v722
        %v743 = vpack.c.b16 %v725, %v724
        %v744 = vpack.c.b16 %v727, %v726
        %v745 = vpack.c.b16 %v729, %v728
        %762 = vmatpush.bf16.msra.mxu0 %v737
        %763 = vmatpush.bf16.msra.mxu0 %v736
        %764 = vmatpush.bf16.msra.mxu0 %v735
        %765 = vmatpush.bf16.msra.mxu0 %v734
        %766 = vmatpush.bf16.msra.mxu0 %v733
        %767 = vmatpush.bf16.msra.mxu0 %v732
        %768 = vmatpush.bf16.msra.mxu0 %v731
        %769 = vmatpush.bf16.msra.mxu0 %v730
        %770 = vmatmul.bf16.gmra.mxu0 %v628
        %v771 = vpop.f32.mrf.mxu0
        %v772 = vadd.f32 %v664, %v771
        %v773 = vpop.f32.mrf.mxu0
        %v774 = vadd.f32 %v664, %v773
        %775 = vdwg.mxu0
        %776 = vmatpush.bf16.msra.mxu0 %v745
        %777 = vmatpush.bf16.msra.mxu0 %v744
        %778 = vmatpush.bf16.msra.mxu0 %v743
        %779 = vmatpush.bf16.msra.mxu0 %v742
        %780 = vmatpush.bf16.msra.mxu0 %v741
        %781 = vmatpush.bf16.msra.mxu0 %v740
        %782 = vmatpush.bf16.msra.mxu0 %v739
        %783 = vmatpush.bf16.msra.mxu0 %v738
        %784 = vmatmul.bf16.gmra.mxu0 %v629
        %v785 = vpop.f32.mrf.mxu0
        %v786 = vadd.f32 %v772, %v785
        %v787 = vpop.f32.mrf.mxu0
        %v788 = vadd.f32 %v774, %v787
        %789 = vdwg.mxu0
        %790 = vst [vmem:[%s403] sm:$0xff] %v786
        %791 = vst [vmem:[%s403 + $0x8] sm:$0xff] %v788
        %s792 = sand.u32 %s193, 1
        %s793 = scalar_lea.sflag [#allocation4], %s792
        %s794 = sand.u32 %s193, 1
        %s795 = smul.addr %s794, 16
        %s796 = scalar_lea.vmem [#allocation11], %s795
        // Predicated region
        $region69: #{tpu_custom_call.1} parent=47 // pred_check
          %p797 = pneg %p203
        $region70: #{tpu_custom_call.1} parent=47 // pred_check_branch
          %799 = sbr.rel (%p797) target = $region72
        $region71: #{tpu_custom_call.1} parent=47 // pred_region
          %s800 = smul.u32 2, %s28
          %s801 = ssub.s32 3, %s800
          %p802 = scmp.lt.s32.totalorder %s801, 2
          %s803 = scalar_select %p802, %s801, 2
          %s804 = smul.u32 8, %s803
          %s805 = ssub.s32 16, %s804
          %s806 = sshll.u32 %s805, 4
          %807 = vsyncadd %s793, %s806
          %p808 = scmp.ne.s32.totalorder 0, %s804
          %s809 = smul.addr %s800, 8
          %s810 = scalar_lea.hbm %s7, %s809
          %s811 = smul.u32 8, %s803
          %s812 = sshll.u32 %s796, 4
          %s813 = int_to_ptr.vmem [resolvable:$true] %s812
          %s814 = sshll.u32 %s810, 4
          %s815 = int_to_ptr.hbm [resolvable:$true] %s814
          %s816 = sshll.u32 %s811, 4
          %820 = dma.vmem_to_hbm [thread:$0]  (%p808), %s813, %s816, %s815, %s793, 128, 128, 8
        $region72: #{tpu_custom_call.1} parent=47 // pred_fallthru
          _
      $region48: #{tpu_custom_call.1} parent=5 // pred_fallthru
        _
      %p821 = scmp.le.s32.totalorder 2, %s23
      // Predicated region
      $region73: #{tpu_custom_call.1} parent=5 // pred_check
        %p822 = pneg %p821
      $region74: #{tpu_custom_call.1} parent=5 // pred_check_branch
        %824 = sbr.rel (%p822) target = $region76
      $region75: #{tpu_custom_call.1} parent=5 // pred_region
        %s825 = ssub.s32 %s23, 2
        // Predicated region
        $region77: #{tpu_custom_call.1} parent=75 // pred_check
          %p826 = pneg %p209
        $region78: #{tpu_custom_call.1} parent=75 // pred_check_branch
          %828 = sbr.rel (%p826) target = $region80
        $region79: #{tpu_custom_call.1} parent=75 // pred_region
          %s829 = sand.u32 %s194, 1
          %s830 = scalar_lea.sflag [#allocation4], %s829
          %s831 = sand.u32 %s194, 1
          %s832 = smul.addr %s831, 16
          %s833 = scalar_lea.vmem [#allocation11], %s832
          %835 = dma.done %s830, 256
        $region80: #{tpu_custom_call.1} parent=75 // pred_fallthru
          _
      $region76: #{tpu_custom_call.1} parent=5 // pred_fallthru
        _
    $region6: #{tpu_custom_call.1} parent=1 // loop_footer
      %s27 = sadd.s32 1, %s23
    $region7: #{tpu_custom_call.1} parent=1 // loop_footer_branch
      %22 = sbr.rel target = $region3
    $region8: #{tpu_custom_call.1} parent=1 // loop_exit
      _
    %836 = vsyncpa [#allocation3], 1
    %s837 = scalar_lea.sflag [#allocation3], 1
    %838 = vsyncpa %s837, 1
    %839 = vsyncpa [#allocation6], 1
    %s840 = scalar_lea.sflag [#allocation6], 1
    %841 = vsyncpa %s840, 1
    %842 = vsyncpa [#allocation9], 1
    %843 = vsyncpa [#allocation4], 1
    %s844 = scalar_lea.sflag [#allocation4], 1
    %845 = vsyncpa %s844, 1

</llo_original>
